<compile_context>
chip_gen: v7x
topology: tpu7x:2x2x1
jax: 0.10.0
libtpu: 0.0.40
codegen_flags: <defaults>
</compile_context>

<pallas_src>
import functools

import jax
import jax.numpy as jnp
from jax.experimental import pallas as pl
from jax.experimental.pallas import tpu as pltpu

LN_EPS = 1e-5  # PyTorch nn.LayerNorm default


def _round_up(n, m):
    return ((n + m - 1) // m) * m


def _pad2(a, rows, cols):
    return jnp.pad(a, ((0, rows - a.shape[0]), (0, cols - a.shape[1])))


def _layernorm_padded(h, gamma, beta, n_real):
    """LayerNorm over the first n_real features of a lane-padded row.

    Assumes h[:, n_real:] == 0 exactly (zero-padded weights/bias), so sums over
    the full padded width equal sums over the real features. One-pass variance.
    """
    inv_n = jnp.float32(1.0 / n_real)
    s = jnp.sum(h, axis=-1, keepdims=True)
    ss = jnp.sum(h * h, axis=-1, keepdims=True)
    mean = s * inv_n
    var = ss * inv_n - mean * mean
    return (h - mean) * jax.lax.rsqrt(var + LN_EPS) * gamma + beta


def actor_kernel(x_ref, w1_ref, w2_ref, w3_ref, vec_ref, o_ref, *, n1, n2):
    d1 = w1_ref.shape[1]   # padded fc1 width
    d2 = w2_ref.shape[1]   # padded fc2 width
    do = w3_ref.shape[1]   # padded action width
    w_dtype = w1_ref.dtype  # f32 or bf16 (MXU fast path); accumulate is always f32

    x = x_ref[...]

    # fc1 -> LayerNorm(real n1 features) -> relu
    h = jnp.dot(x.astype(w_dtype), w1_ref[...],
                preferred_element_type=jnp.float32) + vec_ref[0:1, 0:d1]
    h = _layernorm_padded(h, vec_ref[1:2, 0:d1], vec_ref[2:3, 0:d1], n1)
    h = jnp.maximum(h, 0.0)

    # fc2 -> LayerNorm(real n2 features) -> relu
    h = jnp.dot(h.astype(w_dtype), w2_ref[...],
                preferred_element_type=jnp.float32) + vec_ref[3:4, 0:d2]
    h = _layernorm_padded(h, vec_ref[4:5, 0:d2], vec_ref[5:6, 0:d2], n2)
    h = jnp.maximum(h, 0.0)

    # mu -> relu
    h = jnp.dot(h.astype(w_dtype), w3_ref[...],
                preferred_element_type=jnp.float32) + vec_ref[6:7, 0:do]
    h = jnp.maximum(h, 0.0)

    o_ref[...] = h.astype(o_ref.dtype)


def pack_params(params, mxu_dtype=jnp.float32):
    """Zero-pad feature dims to 128 lanes, pack the 7 small vectors into one
    (8, DP) f32 array, and optionally pre-cast weights to bf16 for the MXU."""
    (w1, b1, g1, be1, w2, b2, g2, be2, w3, b3) = params
    d_in, d1 = w1.shape
    d2 = w2.shape[1]
    na = w3.shape[1]

    D1 = _round_up(d1, 128)
    D2 = _round_up(d2, 128)
    DO = _round_up(na, 128)
    DP = max(D1, D2, DO)

    w1p = _pad2(w1, d_in, D1).astype(mxu_dtype)
    w2p = _pad2(w2, D1, D2).astype(mxu_dtype)
    w3p = _pad2(w3, D2, DO).astype(mxu_dtype)

    def row(v):
        v = jnp.asarray(v, jnp.float32).reshape(1, -1)
        return jnp.pad(v, ((0, 0), (0, DP - v.shape[1])))

    vecs = jnp.concatenate(
        [row(b1), row(g1), row(be1),
         row(b2), row(g2), row(be2),
         row(b3), jnp.zeros((1, DP), jnp.float32)],
        axis=0)  # (8, DP)

    return w1p, w2p, w3p, vecs


@functools.partial(
    jax.jit,
    static_argnames=("fc1_dims", "fc2_dims", "n_actions", "tile_b"))
def actor_forward(x, w1p, w2p, w3p, vecs, *, fc1_dims, fc2_dims, n_actions,
                  tile_b=256):
    B, d_in = x.shape
    D1 = w1p.shape[1]
    D2 = w2p.shape[1]
    DO = w3p.shape[1]

    # Tile the batch: multiple of 8 (f32 sublane tile), capped by tile_b.
    tb = max(8, min(tile_b, _round_up(B, 8)))
    B_pad = _round_up(B, tb)
    if B_pad != B:
        x = jnp.pad(x, ((0, B_pad - B), (0, 0)))

    grid = (B_pad // tb,)
    kernel = functools.partial(actor_kernel, n1=fc1_dims, n2=fc2_dims)

    itemsize_w = jnp.dtype(w1p.dtype).itemsize
    flops = 2 * B_pad * (d_in * D1 + D1 * D2 + D2 * DO)
    bytes_accessed = (4 * B_pad * (d_in + DO)
                      + itemsize_w * (w1p.size + w2p.size + w3p.size)
                      + 4 * vecs.size)

    out = pl.pallas_call(
        kernel,
        out_shape=jax.ShapeDtypeStruct((B_pad, DO), jnp.float32),
        grid=grid,
        in_specs=[
            pl.BlockSpec((tb, d_in), lambda i: (i, 0)),      # x tile (pipelined)
            pl.BlockSpec((d_in, D1), lambda i: (0, 0)),      # weights resident
            pl.BlockSpec((D1, D2), lambda i: (0, 0)),
            pl.BlockSpec((D2, DO), lambda i: (0, 0)),
            pl.BlockSpec(vecs.shape, lambda i: (0, 0)),      # packed b/gamma/beta
        ],
        out_specs=pl.BlockSpec((tb, DO), lambda i: (i, 0)),  # lane-dense store
        compiler_params=pltpu.CompilerParams(
            dimension_semantics=("parallel",),
            vmem_limit_bytes=16 << 20),
        cost_estimate=pl.CostEstimate(
            flops=flops,
            transcendentals=2 * B_pad,
            bytes_accessed=bytes_accessed),
    )(x, w1p, w2p, w3p, vecs)

    return out[:B, :n_actions]


def init_params(key, input_dim, fc1_dims, fc2_dims, n_actions):
    """Replicate the PyTorch init of the source module: uniform(0, f) with
    f = 1/sqrt(weight.size()[0]) (= out_features) for fc1/fc2 and f3 = 0.003 for
    mu. LayerNorm params are ones / zeros. Weights kept as [in, out]."""
    ks = jax.random.split(key, 6)
    f1 = 1.0 / jnp.sqrt(jnp.float32(fc1_dims))
    f2 = 1.0 / jnp.sqrt(jnp.float32(fc2_dims))
    f3 = 0.003

    w1 = jax.random.uniform(ks[0], (input_dim, fc1_dims), jnp.float32, 0.0, f1)
    b1 = jax.random.uniform(ks[1], (1, fc1_dims), jnp.float32, 0.0, f1)
    g1 = jnp.ones((1, fc1_dims), jnp.float32)
    be1 = jnp.zeros((1, fc1_dims), jnp.float32)

    w2 = jax.random.uniform(ks[2], (fc1_dims, fc2_dims), jnp.float32, 0.0, f2)
    b2 = jax.random.uniform(ks[3], (1, fc2_dims), jnp.float32, 0.0, f2)
    g2 = jnp.ones((1, fc2_dims), jnp.float32)
    be2 = jnp.zeros((1, fc2_dims), jnp.float32)

    w3 = jax.random.uniform(ks[4], (fc2_dims, n_actions), jnp.float32, 0.0, f3)
    b3 = jax.random.uniform(ks[5], (1, n_actions), jnp.float32, 0.0, f3)

    return (w1, b1, g1, be1, w2, b2, g2, be2, w3, b3)


def reference_forward(x, params):
    """Pure-JAX reference of the PyTorch forward (unpadded, two-pass LayerNorm)."""
    (w1, b1, g1, be1, w2, b2, g2, be2, w3, b3) = params

    def ln(h, gamma, beta):
        mu = jnp.mean(h, axis=-1, keepdims=True)
        var = jnp.mean(jnp.square(h - mu), axis=-1, keepdims=True)
        return (h - mu) * jax.lax.rsqrt(var + LN_EPS) * gamma + beta

    h = x @ w1 + b1
    h = jnp.maximum(ln(h, g1, be1), 0.0)
    h = h @ w2 + b2
    h = jnp.maximum(ln(h, g2, be2), 0.0)
    return jnp.maximum(h @ w3 + b3, 0.0)


if __name__ == "__main__":
    # Small shapes consistent with the module: state dim 16, fc1=64, fc2=64, 8 actions.
    batch, input_dim, fc1_dims, fc2_dims, n_actions = 2, 16, 64, 64, 8

    key = jax.random.PRNGKey(0)
    kx, kp = jax.random.split(key)
    x = jax.random.normal(kx, (batch, input_dim), dtype=jnp.float32)
    params = init_params(kp, input_dim, fc1_dims, fc2_dims, n_actions)
    ref = reference_forward(x, params)

    # Exact-semantics path: f32 MXU operands.
    w1p, w2p, w3p, vecs = pack_params(params, mxu_dtype=jnp.float32)
    out = actor_forward(x, w1p, w2p, w3p, vecs,
                        fc1_dims=fc1_dims, fc2_dims=fc2_dims,
                        n_actions=n_actions)
    out = jax.block_until_ready(out)
    assert out.shape == (batch, n_actions)
    assert jnp.allclose(out, ref, atol=1e-4, rtol=1e-4), "f32 mismatch vs reference"

    # bf16 MXU fast path (native on v6e/v7x): weights pre-cast once in the wrapper,
    # LayerNorm / relu stay f32. Loose tolerance: bf16 operands, f32 accumulate.
    w1b, w2b, w3b, vecsb = pack_params(params, mxu_dtype=jnp.bfloat16)
    out_bf16 = actor_forward(x, w1b, w2b, w3b, vecsb,
                             fc1_dims=fc1_dims, fc2_dims=fc2_dims,
                             n_actions=n_actions)
    out_bf16 = jax.block_until_ready(out_bf16)
    assert out_bf16.shape == (batch, n_actions)
    assert bool(jnp.all(jnp.isfinite(out_bf16)))
    assert jnp.allclose(out_bf16, ref, atol=1e-1, rtol=1e-1), "bf16 path mismatch"

    print("KERNEL_OK")
</pallas_src>

<mosaic_0001>
module attributes {stable_mosaic.version = 11 : i64} {
  func.func @actor_kernel(%arg0: i32, %arg1: memref<8x16xf32, #tpu.memory_space<vmem>>, %arg2: memref<16x128xf32, #tpu.memory_space<vmem>>, %arg3: memref<128x128xf32, #tpu.memory_space<vmem>>, %arg4: memref<128x128xf32, #tpu.memory_space<vmem>>, %arg5: memref<8x128xf32, #tpu.memory_space<vmem>>, %arg6: memref<8x128xf32, #tpu.memory_space<vmem>>) attributes {dimension_semantics = [#tpu.dimension_semantics<parallel>], iteration_bounds = array<i64: 1>, scalar_prefetch = 0 : i64, scratch_operands = 0 : i64, tpu.core_type = #tpu.core_type<tc>, window_params = [{transform_indices = @transform_0, window_bounds = array<i64: 8, 16>}, {pipeline_mode = #tpu.pipeline_mode<synchronous>, transform_indices = @transform_1, window_bounds = array<i64: 16, 128>}, {pipeline_mode = #tpu.pipeline_mode<synchronous>, transform_indices = @transform_2, window_bounds = array<i64: 128, 128>}, {pipeline_mode = #tpu.pipeline_mode<synchronous>, transform_indices = @transform_3, window_bounds = array<i64: 128, 128>}, {pipeline_mode = #tpu.pipeline_mode<synchronous>, transform_indices = @transform_4, window_bounds = array<i64: 8, 128>}, {transform_indices = @transform_5, window_bounds = array<i64: 8, 128>}]} {
    %c0 = arith.constant 0 : index
    %c0_0 = arith.constant 0 : index
    %0 = vector.load %arg1[%c0, %c0_0] : memref<8x16xf32, #tpu.memory_space<vmem>>, vector<8x16xf32>
    %c0_1 = arith.constant 0 : index
    %c0_2 = arith.constant 0 : index
    %1 = vector.load %arg2[%c0_1, %c0_2] : memref<16x128xf32, #tpu.memory_space<vmem>>, vector<16x128xf32>
    %cst = arith.constant dense<0.000000e+00> : vector<8x128xf32>
    %2 = tpu.matmul %0, %1, %cst {dimension_numbers = #tpu.dot_dimension_numbers<[1], [0], [0], [1], [0, 0, 1, 1], [], []>} : vector<8x16xf32>, vector<16x128xf32>, vector<8x128xf32> -> vector<8x128xf32>
    %c0_3 = arith.constant 0 : index
    %c0_4 = arith.constant 0 : index
    %3 = vector.load %arg5[%c0_3, %c0_4] : memref<8x128xf32, #tpu.memory_space<vmem>>, vector<1x128xf32>
    %4 = vector.broadcast %3 : vector<1x128xf32> to vector<8x128xf32>
    %5 = arith.addf %2, %4 : vector<8x128xf32>
    %c1 = arith.constant 1 : index
    %c0_5 = arith.constant 0 : index
    %6 = vector.load %arg5[%c1, %c0_5] : memref<8x128xf32, #tpu.memory_space<vmem>>, vector<1x128xf32>
    %c2 = arith.constant 2 : index
    %c0_6 = arith.constant 0 : index
    %7 = vector.load %arg5[%c2, %c0_6] : memref<8x128xf32, #tpu.memory_space<vmem>>, vector<1x128xf32>
    %cst_7 = arith.constant dense<0.000000e+00> : vector<8xf32>
    %8 = vector.multi_reduction <add>, %5, %cst_7 [1] : vector<8x128xf32> to vector<8xf32>
    %9 = vector.shape_cast %8 : vector<8xf32> to vector<8x1xf32>
    %10 = arith.mulf %5, %5 : vector<8x128xf32>
    %cst_8 = arith.constant dense<0.000000e+00> : vector<8xf32>
    %11 = vector.multi_reduction <add>, %10, %cst_8 [1] : vector<8x128xf32> to vector<8xf32>
    %12 = vector.shape_cast %11 : vector<8xf32> to vector<8x1xf32>
    %cst_9 = arith.constant 1.562500e-02 : f32
    %13 = vector.broadcast %cst_9 : f32 to vector<8x1xf32>
    %14 = arith.mulf %9, %13 : vector<8x1xf32>
    %cst_10 = arith.constant 1.562500e-02 : f32
    %15 = vector.broadcast %cst_10 : f32 to vector<8x1xf32>
    %16 = arith.mulf %12, %15 : vector<8x1xf32>
    %17 = arith.mulf %14, %14 : vector<8x1xf32>
    %18 = arith.subf %16, %17 : vector<8x1xf32>
    %19 = vector.broadcast %14 : vector<8x1xf32> to vector<8x128xf32>
    %20 = arith.subf %5, %19 : vector<8x128xf32>
    %cst_11 = arith.constant 9.99999974E-6 : f32
    %21 = vector.broadcast %cst_11 : f32 to vector<8x1xf32>
    %22 = arith.addf %18, %21 : vector<8x1xf32>
    %23 = math.rsqrt %22 : vector<8x1xf32>
    %24 = vector.broadcast %23 : vector<8x1xf32> to vector<8x128xf32>
    %25 = arith.mulf %20, %24 : vector<8x128xf32>
    %26 = vector.broadcast %6 : vector<1x128xf32> to vector<8x128xf32>
    %27 = arith.mulf %25, %26 : vector<8x128xf32>
    %28 = vector.broadcast %7 : vector<1x128xf32> to vector<8x128xf32>
    %29 = arith.addf %27, %28 : vector<8x128xf32>
    %cst_12 = arith.constant 0.000000e+00 : f32
    %30 = vector.broadcast %cst_12 : f32 to vector<8x128xf32>
    %31 = arith.maximumf %29, %30 : vector<8x128xf32>
    %c0_13 = arith.constant 0 : index
    %c0_14 = arith.constant 0 : index
    %32 = vector.load %arg3[%c0_13, %c0_14] : memref<128x128xf32, #tpu.memory_space<vmem>>, vector<128x128xf32>
    %cst_15 = arith.constant dense<0.000000e+00> : vector<8x128xf32>
    %33 = tpu.matmul %31, %32, %cst_15 {dimension_numbers = #tpu.dot_dimension_numbers<[1], [0], [0], [1], [0, 0, 1, 1], [], []>} : vector<8x128xf32>, vector<128x128xf32>, vector<8x128xf32> -> vector<8x128xf32>
    %c3 = arith.constant 3 : index
    %c0_16 = arith.constant 0 : index
    %34 = vector.load %arg5[%c3, %c0_16] : memref<8x128xf32, #tpu.memory_space<vmem>>, vector<1x128xf32>
    %35 = vector.broadcast %34 : vector<1x128xf32> to vector<8x128xf32>
    %36 = arith.addf %33, %35 : vector<8x128xf32>
    %c4 = arith.constant 4 : index
    %c0_17 = arith.constant 0 : index
    %37 = vector.load %arg5[%c4, %c0_17] : memref<8x128xf32, #tpu.memory_space<vmem>>, vector<1x128xf32>
    %c5 = arith.constant 5 : index
    %c0_18 = arith.constant 0 : index
    %38 = vector.load %arg5[%c5, %c0_18] : memref<8x128xf32, #tpu.memory_space<vmem>>, vector<1x128xf32>
    %cst_19 = arith.constant dense<0.000000e+00> : vector<8xf32>
    %39 = vector.multi_reduction <add>, %36, %cst_19 [1] : vector<8x128xf32> to vector<8xf32>
    %40 = vector.shape_cast %39 : vector<8xf32> to vector<8x1xf32>
    %41 = arith.mulf %36, %36 : vector<8x128xf32>
    %cst_20 = arith.constant dense<0.000000e+00> : vector<8xf32>
    %42 = vector.multi_reduction <add>, %41, %cst_20 [1] : vector<8x128xf32> to vector<8xf32>
    %43 = vector.shape_cast %42 : vector<8xf32> to vector<8x1xf32>
    %cst_21 = arith.constant 1.562500e-02 : f32
    %44 = vector.broadcast %cst_21 : f32 to vector<8x1xf32>
    %45 = arith.mulf %40, %44 : vector<8x1xf32>
    %cst_22 = arith.constant 1.562500e-02 : f32
    %46 = vector.broadcast %cst_22 : f32 to vector<8x1xf32>
    %47 = arith.mulf %43, %46 : vector<8x1xf32>
    %48 = arith.mulf %45, %45 : vector<8x1xf32>
    %49 = arith.subf %47, %48 : vector<8x1xf32>
    %50 = vector.broadcast %45 : vector<8x1xf32> to vector<8x128xf32>
    %51 = arith.subf %36, %50 : vector<8x128xf32>
    %cst_23 = arith.constant 9.99999974E-6 : f32
    %52 = vector.broadcast %cst_23 : f32 to vector<8x1xf32>
    %53 = arith.addf %49, %52 : vector<8x1xf32>
    %54 = math.rsqrt %53 : vector<8x1xf32>
    %55 = vector.broadcast %54 : vector<8x1xf32> to vector<8x128xf32>
    %56 = arith.mulf %51, %55 : vector<8x128xf32>
    %57 = vector.broadcast %37 : vector<1x128xf32> to vector<8x128xf32>
    %58 = arith.mulf %56, %57 : vector<8x128xf32>
    %59 = vector.broadcast %38 : vector<1x128xf32> to vector<8x128xf32>
    %60 = arith.addf %58, %59 : vector<8x128xf32>
    %cst_24 = arith.constant 0.000000e+00 : f32
    %61 = vector.broadcast %cst_24 : f32 to vector<8x128xf32>
    %62 = arith.maximumf %60, %61 : vector<8x128xf32>
    %c0_25 = arith.constant 0 : index
    %c0_26 = arith.constant 0 : index
    %63 = vector.load %arg4[%c0_25, %c0_26] : memref<128x128xf32, #tpu.memory_space<vmem>>, vector<128x128xf32>
    %cst_27 = arith.constant dense<0.000000e+00> : vector<8x128xf32>
    %64 = tpu.matmul %62, %63, %cst_27 {dimension_numbers = #tpu.dot_dimension_numbers<[1], [0], [0], [1], [0, 0, 1, 1], [], []>} : vector<8x128xf32>, vector<128x128xf32>, vector<8x128xf32> -> vector<8x128xf32>
    %c6 = arith.constant 6 : index
    %c0_28 = arith.constant 0 : index
    %65 = vector.load %arg5[%c6, %c0_28] : memref<8x128xf32, #tpu.memory_space<vmem>>, vector<1x128xf32>
    %66 = vector.broadcast %65 : vector<1x128xf32> to vector<8x128xf32>
    %67 = arith.addf %64, %66 : vector<8x128xf32>
    %cst_29 = arith.constant 0.000000e+00 : f32
    %68 = vector.broadcast %cst_29 : f32 to vector<8x128xf32>
    %69 = arith.maximumf %67, %68 : vector<8x128xf32>
    %c0_30 = arith.constant 0 : index
    %c0_31 = arith.constant 0 : index
    %70 = vector.load %arg6[%c0_30, %c0_31] : memref<8x128xf32, #tpu.memory_space<vmem>>, vector<8x128xf32>
    tpu.vector_store %arg6[%c0_30, %c0_31], %69 {strides = array<i32>} : memref<8x128xf32, #tpu.memory_space<vmem>>, vector<8x128xf32>,
    return
  }
  func.func @transform_0(%arg0: i32) -> (i32, i32) {
    %c0_i32 = arith.constant 0 : i32
    %c0_i32_0 = arith.constant 0 : i32
    return %arg0, %c0_i32 : i32, i32
  }
  func.func @transform_1(%arg0: i32) -> (i32, i32) {
    %c0_i32 = arith.constant 0 : i32
    %c0_i32_0 = arith.constant 0 : i32
    %c0_i32_1 = arith.constant 0 : i32
    return %c0_i32, %c0_i32_0 : i32, i32
  }
  func.func @transform_2(%arg0: i32) -> (i32, i32) {
    %c0_i32 = arith.constant 0 : i32
    %c0_i32_0 = arith.constant 0 : i32
    %c0_i32_1 = arith.constant 0 : i32
    return %c0_i32, %c0_i32_0 : i32, i32
  }
  func.func @transform_3(%arg0: i32) -> (i32, i32) {
    %c0_i32 = arith.constant 0 : i32
    %c0_i32_0 = arith.constant 0 : i32
    %c0_i32_1 = arith.constant 0 : i32
    return %c0_i32, %c0_i32_0 : i32, i32
  }
  func.func @transform_4(%arg0: i32) -> (i32, i32) {
    %c0_i32 = arith.constant 0 : i32
    %c0_i32_0 = arith.constant 0 : i32
    %c0_i32_1 = arith.constant 0 : i32
    return %c0_i32, %c0_i32_0 : i32, i32
  }
  func.func @transform_5(%arg0: i32) -> (i32, i32) {
    %c0_i32 = arith.constant 0 : i32
    %c0_i32_0 = arith.constant 0 : i32
    return %arg0, %c0_i32 : i32, i32
  }
}

</mosaic_0001>

<llo_original>
// kernel: actor_forward.1
$region0: #{actor_forward.1}
  #allocation0 [shape = 'u32[]', space=smem, size = 0x4, offset = 0x4, fixed_abs, tag = 'smem constant byte address 0x4 - core index']
  #allocation1 [shape = 'u32[144,128]{1,0:T(1,128)}', space=vmem, size = 0x12000, scoped, tag = 'internal scratch']
  %s0 = inlined_call_operand.vmem [shape: f32[8,16], index: 0, kind: input, shape index: {}]
  %s1 = inlined_call_operand.hbm [shape: f32[16,128], index: 1, kind: input, shape index: {}]
  %s2 = inlined_call_operand.hbm [shape: f32[128,128], index: 2, kind: input, shape index: {}]
  %s3 = inlined_call_operand.hbm [shape: f32[128,128], index: 3, kind: input, shape index: {}]
  %s4 = inlined_call_operand.vmem [shape: f32[8,128], index: 4, kind: input, shape index: {}]
  %s5 = inlined_call_operand.vmem [shape: f32[8,128], index: 5, kind: output, shape index: {}]
  %s6 = sld [smem:[#allocation0]]
  $region42: #{actor_forward.1} parent=0
    _
  %s8 = ssub.s32 1, %s6
  %s9 = scalar_select 0, %s8, %s6
  $region1: #{actor_forward.1} parent=0
    #allocation2 [shape = 'u8[8192]{0}', space=vmem, size = 0x2000, scoped, tag = 'input window, operand 1, single buffered']
    #allocation3 [shape = 's32[1]{0}', space=sflag, size = 0x4, scoped, tag = 'scoped memory for actor_forward.1']
    #allocation4 [shape = 'u8[65536]{0}', space=vmem, size = 0x10000, scoped, tag = 'input window, operand 2, single buffered']
    #allocation5 [shape = 's32[1]{0}', space=sflag, size = 0x4, scoped, tag = 'scoped memory for actor_forward.1']
    #allocation6 [shape = 'u8[65536]{0}', space=vmem, size = 0x10000, scoped, tag = 'input window, operand 3, single buffered']
    %10 = vsyncpa [#allocation3], 0
    %11 = vsyncpa [#allocation5], 0
    // Predicated region
    $region2: #{actor_forward.1} parent=1 // pred_check
      _
    $region3: #{actor_forward.1} parent=1 // pred_check_branch
      %13 = sbr.rel (0) target = $region5
    $region4: #{actor_forward.1} parent=1 // pred_region
      _
    $region5: #{actor_forward.1} parent=1 // pred_fallthru
      _
    // Predicated region
    $region6: #{actor_forward.1} parent=1 // pred_check
      _
    $region7: #{actor_forward.1} parent=1 // pred_check_branch
      %15 = sbr.rel (0) target = $region9
    $region8: #{actor_forward.1} parent=1 // pred_region
      %s17 = ssub.s32 256, 256
      %18 = vsyncadd [#allocation3], %s17
      %s19 = sshll.u32 [#allocation2], 4
      %s20 = int_to_ptr.vmem [resolvable:$true] %s19
      %25 = dma.hbm_to_vmem [thread:$0]  %s1, 256, %s20, [#allocation3], 128, 128, 8
    $region9: #{actor_forward.1} parent=1 // pred_fallthru
      _
    // Predicated region
    $region10: #{actor_forward.1} parent=1 // pred_check
      _
    $region11: #{actor_forward.1} parent=1 // pred_check_branch
      %27 = sbr.rel (0) target = $region13
    $region12: #{actor_forward.1} parent=1 // pred_region
      %s29 = ssub.s32 2048, 2048
      %30 = vsyncadd [#allocation5], %s29
      %s31 = sshll.u32 [#allocation4], 4
      %s32 = int_to_ptr.vmem [resolvable:$true] %s31
      %37 = dma.hbm_to_vmem [thread:$0]  %s2, 2048, %s32, [#allocation5], 128, 128, 8
    $region13: #{actor_forward.1} parent=1 // pred_fallthru
      _
    // Predicated region
    $region14: #{actor_forward.1} parent=1 // pred_check
      _
    $region15: #{actor_forward.1} parent=1 // pred_check_branch
      %39 = sbr.rel (0) target = $region17
    $region16: #{actor_forward.1} parent=1 // pred_region
      %s41 = ssub.s32 2048, 2048
      %42 = vsyncadd [#allocation5], %s41
      %s43 = sshll.u32 [#allocation6], 4
      %s44 = int_to_ptr.vmem [resolvable:$true] %s43
      %49 = dma.hbm_to_vmem [thread:$0]  %s3, 2048, %s44, [#allocation5], 128, 128, 8
    $region17: #{actor_forward.1} parent=1 // pred_fallthru
      _
    // Predicated region
    $region18: #{actor_forward.1} parent=1 // pred_check
      _
    $region19: #{actor_forward.1} parent=1 // pred_check_branch
      %51 = sbr.rel (0) target = $region21
    $region20: #{actor_forward.1} parent=1 // pred_region
      _
    $region21: #{actor_forward.1} parent=1 // pred_fallthru
      _
    // Predicated region
    $region22: #{actor_forward.1} parent=1 // pred_check
      _
    $region23: #{actor_forward.1} parent=1 // pred_check_branch
      %53 = sbr.rel (0) target = $region25
    $region24: #{actor_forward.1} parent=1 // pred_region
      %54 = dma.done [#allocation3], 256
    $region25: #{actor_forward.1} parent=1 // pred_fallthru
      _
    // Predicated region
    $region26: #{actor_forward.1} parent=1 // pred_check
      _
    $region27: #{actor_forward.1} parent=1 // pred_check_branch
      %56 = sbr.rel (0) target = $region29
    $region28: #{actor_forward.1} parent=1 // pred_region
      %57 = dma.done [#allocation5], 2048
    $region29: #{actor_forward.1} parent=1 // pred_fallthru
      _
    // Predicated region
    $region30: #{actor_forward.1} parent=1 // pred_check
      _
    $region31: #{actor_forward.1} parent=1 // pred_check_branch
      %59 = sbr.rel (0) target = $region33
    $region32: #{actor_forward.1} parent=1 // pred_region
      %60 = dma.done [#allocation5], 2048
    $region33: #{actor_forward.1} parent=1 // pred_fallthru
      _
    %v61 = vld [vmem:[%s0] sm:$0xff]
    %v62 = vld [vmem:[#allocation2] sm:$0xff]
    %v63 = vld [vmem:[#allocation2 + $0x8] sm:$0xff]
    %v64 = vld [vmem:[%s4] sm:$0x1]
    %v65 = vlaneseq
    %v66 = vshrl.u32 %v65, 7
    %v67 = vsub.s32 0, %v66
    %v68 = vrot.slane %v64, %v67
    %vm69 = vcmask 130048
    %v71 = vsel %vm69, %v61, 0
    %73 = vmatprep.subr.mxu0 0.0
    %74 = vmatpush1.msra.mxu0 %v62
    %75 = vmatprep.subr.mxu0 0.0
    %76 = vmatpush1.msra.mxu0 %v63
    %77 = vmatprep.subr.mxu0 0.0
    %78 = vmatpush1.msra.mxu0 0.0
    %79 = vmatprep.subr.mxu0 0.0
    %80 = vmatpush1.msra.mxu0 0.0
    %81 = vmatprep.subr.mxu0 0.0
    %82 = vmatpush1.msra.mxu0 0.0
    %83 = vmatprep.subr.mxu0 0.0
    %84 = vmatpush1.msra.mxu0 0.0
    %85 = vmatprep.subr.mxu0 0.0
    %86 = vmatpush1.msra.mxu0 0.0
    %87 = vmatprep.subr.mxu0 0.0
    %88 = vmatpush1.msra.mxu0 0.0
    %89 = vmatprep.subr.mxu0 0.0
    %90 = vmatpush1.msra.mxu0 0.0
    %91 = vmatprep.subr.mxu0 0.0
    %92 = vmatpush1.msra.mxu0 0.0
    %93 = vmatprep.subr.mxu0 0.0
    %94 = vmatpush1.msra.mxu0 0.0
    %95 = vmatprep.subr.mxu0 0.0
    %96 = vmatpush1.msra.mxu0 0.0
    %97 = vmatprep.subr.mxu0 0.0
    %98 = vmatpush1.msra.mxu0 0.0
    %99 = vmatprep.subr.mxu0 0.0
    %100 = vmatpush1.msra.mxu0 0.0
    %101 = vmatprep.subr.mxu0 0.0
    %102 = vmatpush1.msra.mxu0 0.0
    %103 = vmatprep.subr.mxu0 0.0
    %104 = vmatpush1.msra.mxu0 0.0
    %105 = vmatprep.subr.mxu0 0.0
    %106 = vmatpush1.msra.mxu0 0.0
    %107 = vmatprep.subr.mxu0 0.0
    %108 = vmatpush1.msra.mxu0 0.0
    %109 = vmatprep.subr.mxu0 0.0
    %110 = vmatpush1.msra.mxu0 0.0
    %111 = vmatprep.subr.mxu0 0.0
    %112 = vmatpush1.msra.mxu0 0.0
    %113 = vmatprep.subr.mxu0 0.0
    %114 = vmatpush1.msra.mxu0 0.0
    %115 = vmatprep.subr.mxu0 0.0
    %116 = vmatpush1.msra.mxu0 0.0
    %117 = vmatprep.subr.mxu0 0.0
    %118 = vmatpush1.msra.mxu0 0.0
    %119 = vmatprep.subr.mxu0 0.0
    %120 = vmatpush1.msra.mxu0 0.0
    %121 = vmatprep.subr.mxu0 0.0
    %122 = vmatpush1.msra.mxu0 0.0
    %123 = vmatprep.subr.mxu0 0.0
    %124 = vmatpush1.msra.mxu0 0.0
    %125 = vmatprep.subr.mxu0 0.0
    %126 = vmatpush1.msra.mxu0 0.0
    %127 = vmatprep.subr.mxu0 0.0
    %128 = vmatpush1.msra.mxu0 0.0
    %129 = vmatprep.subr.mxu0 0.0
    %130 = vmatpush1.msra.mxu0 0.0
    %131 = vmatprep.subr.mxu0 0.0
    %132 = vmatpush1.msra.mxu0 0.0
    %133 = vmatprep.subr.mxu0 0.0
    %134 = vmatpush1.msra.mxu0 0.0
    %135 = vmatprep.subr.mxu0 0.0
    %136 = vmatpush1.msra.mxu0 0.0
    %137 = vmatprep.mubr.f32.mxu0 0.0
    %138 = vmatmul.mubr.f32.gmra.mrb[0].mxu0 %v71
    %v139 = vpop.f32.mrb[0].mxu0
    %v140 = vadd.f32 %v68, %v139
    %v141 = vpop.f32.mrb[0].mxu0
    %142 = vdwg.mxu0
    %v143 = vld [vmem:[%s4 + $0x1] sm:$0x1]
    %v144 = vld [vmem:[%s4 + $0x2] sm:$0x1]
    %145 = vadd.xlane.f32.xlu0 %v140
    %v146 = vpop.xlane.xlu0 %145
    %v147 = vmul.f32 %v140, %v140
    %148 = vadd.xlane.f32.xlu0 %v147
    %v149 = vpop.xlane.xlu0 %148
    %v150 = vmul.f32 %v146, 0.015625
    %v151 = vmul.f32 %v149, 0.015625
    %v152 = vmul.f32 %v150, %v150
    %v153 = vsub.f32 %v151, %v152
    %v154 = vsub.f32 %v140, %v150
    %v155 = vadd.f32 %v153, 1e-05
    %v156 = vrsqrt.pop %v155
    %v157 = vmul.f32 %v154, %v156
    %v158 = vlaneseq
    %v159 = vshrl.u32 %v158, 7
    %v160 = vsub.s32 0, %v159
    %v161 = vrot.slane %v143, %v160
    %v162 = vmul.f32 %v157, %v161
    %v163 = vlaneseq
    %v164 = vshrl.u32 %v163, 7
    %v165 = vsub.s32 0, %v164
    %v166 = vrot.slane %v144, %v165
    %v167 = vadd.f32 %v162, %v166
    %v168 = vmax.f32 %v167, 0.0
    %v169 = vld [vmem:[#allocation4] sm:$0xff]
    %v170 = vld [vmem:[#allocation4 + $0x8] sm:$0xff]
    %v171 = vld [vmem:[#allocation4 + $0x10] sm:$0xff]
    %v172 = vld [vmem:[#allocation4 + $0x18] sm:$0xff]
    %v173 = vld [vmem:[#allocation4 + $0x20] sm:$0xff]
    %v174 = vld [vmem:[#allocation4 + $0x28] sm:$0xff]
    %v175 = vld [vmem:[#allocation4 + $0x30] sm:$0xff]
    %v176 = vld [vmem:[#allocation4 + $0x38] sm:$0xff]
    %v177 = vld [vmem:[#allocation4 + $0x40] sm:$0xff]
    %v178 = vld [vmem:[#allocation4 + $0x48] sm:$0xff]
    %v179 = vld [vmem:[#allocation4 + $0x50] sm:$0xff]
    %v180 = vld [vmem:[#allocation4 + $0x58] sm:$0xff]
    %v181 = vld [vmem:[#allocation4 + $0x60] sm:$0xff]
    %v182 = vld [vmem:[#allocation4 + $0x68] sm:$0xff]
    %v183 = vld [vmem:[#allocation4 + $0x70] sm:$0xff]
    %v184 = vld [vmem:[#allocation4 + $0x78] sm:$0xff]
    %v185 = vld [vmem:[%s4 + $0x3] sm:$0x1]
    %v186 = vlaneseq
    %v187 = vshrl.u32 %v186, 7
    %v188 = vsub.s32 0, %v187
    %v189 = vrot.slane %v185, %v188
    %190 = vmatprep.subr.mxu0 0.0
    %191 = vmatpush1.msra.mxu0 %v169
    %192 = vmatprep.subr.mxu0 0.0
    %193 = vmatpush1.msra.mxu0 %v170
    %194 = vmatprep.subr.mxu0 0.0
    %195 = vmatpush1.msra.mxu0 %v171
    %196 = vmatprep.subr.mxu0 0.0
    %197 = vmatpush1.msra.mxu0 %v172
    %198 = vmatprep.subr.mxu0 0.0
    %199 = vmatpush1.msra.mxu0 %v173
    %200 = vmatprep.subr.mxu0 0.0
    %201 = vmatpush1.msra.mxu0 %v174
    %202 = vmatprep.subr.mxu0 0.0
    %203 = vmatpush1.msra.mxu0 %v175
    %204 = vmatprep.subr.mxu0 0.0
    %205 = vmatpush1.msra.mxu0 %v176
    %206 = vmatprep.subr.mxu0 0.0
    %207 = vmatpush1.msra.mxu0 %v177
    %208 = vmatprep.subr.mxu0 0.0
    %209 = vmatpush1.msra.mxu0 %v178
    %210 = vmatprep.subr.mxu0 0.0
    %211 = vmatpush1.msra.mxu0 %v179
    %212 = vmatprep.subr.mxu0 0.0
    %213 = vmatpush1.msra.mxu0 %v180
    %214 = vmatprep.subr.mxu0 0.0
    %215 = vmatpush1.msra.mxu0 %v181
    %216 = vmatprep.subr.mxu0 0.0
    %217 = vmatpush1.msra.mxu0 %v182
    %218 = vmatprep.subr.mxu0 0.0
    %219 = vmatpush1.msra.mxu0 %v183
    %220 = vmatprep.subr.mxu0 0.0
    %221 = vmatpush1.msra.mxu0 %v184
    %222 = vmatprep.subr.mxu0 0.0
    %223 = vmatpush1.msra.mxu0 0.0
    %224 = vmatprep.subr.mxu0 0.0
    %225 = vmatpush1.msra.mxu0 0.0
    %226 = vmatprep.subr.mxu0 0.0
    %227 = vmatpush1.msra.mxu0 0.0
    %228 = vmatprep.subr.mxu0 0.0
    %229 = vmatpush1.msra.mxu0 0.0
    %230 = vmatprep.subr.mxu0 0.0
    %231 = vmatpush1.msra.mxu0 0.0
    %232 = vmatprep.subr.mxu0 0.0
    %233 = vmatpush1.msra.mxu0 0.0
    %234 = vmatprep.subr.mxu0 0.0
    %235 = vmatpush1.msra.mxu0 0.0
    %236 = vmatprep.subr.mxu0 0.0
    %237 = vmatpush1.msra.mxu0 0.0
    %238 = vmatprep.subr.mxu0 0.0
    %239 = vmatpush1.msra.mxu0 0.0
    %240 = vmatprep.subr.mxu0 0.0
    %241 = vmatpush1.msra.mxu0 0.0
    %242 = vmatprep.subr.mxu0 0.0
    %243 = vmatpush1.msra.mxu0 0.0
    %244 = vmatprep.subr.mxu0 0.0
    %245 = vmatpush1.msra.mxu0 0.0
    %246 = vmatprep.subr.mxu0 0.0
    %247 = vmatpush1.msra.mxu0 0.0
    %248 = vmatprep.subr.mxu0 0.0
    %249 = vmatpush1.msra.mxu0 0.0
    %250 = vmatprep.subr.mxu0 0.0
    %251 = vmatpush1.msra.mxu0 0.0
    %252 = vmatprep.subr.mxu0 0.0
    %253 = vmatpush1.msra.mxu0 0.0
    %254 = vmatprep.mubr.f32.mxu0 0.0
    %255 = vmatmul.mubr.f32.gmra.mrb[0].mxu0 %v168
    %v256 = vpop.f32.mrb[0].mxu0
    %v257 = vadd.f32 %v189, %v256
    %v258 = vpop.f32.mrb[0].mxu0
    %259 = vdwg.mxu0
    %v260 = vld [vmem:[%s4 + $0x4] sm:$0x1]
    %v261 = vld [vmem:[%s4 + $0x5] sm:$0x1]
    %262 = vadd.xlane.f32.xlu0 %v257
    %v263 = vpop.xlane.xlu0 %262
    %v264 = vmul.f32 %v257, %v257
    %265 = vadd.xlane.f32.xlu0 %v264
    %v266 = vpop.xlane.xlu0 %265
    %v267 = vmul.f32 %v263, 0.015625
    %v268 = vmul.f32 %v266, 0.015625
    %v269 = vmul.f32 %v267, %v267
    %v270 = vsub.f32 %v268, %v269
    %v271 = vsub.f32 %v257, %v267
    %v272 = vadd.f32 %v270, 1e-05
    %v273 = vrsqrt.pop %v272
    %v274 = vmul.f32 %v271, %v273
    %v275 = vlaneseq
    %v276 = vshrl.u32 %v275, 7
    %v277 = vsub.s32 0, %v276
    %v278 = vrot.slane %v260, %v277
    %v279 = vmul.f32 %v274, %v278
    %v280 = vlaneseq
    %v281 = vshrl.u32 %v280, 7
    %v282 = vsub.s32 0, %v281
    %v283 = vrot.slane %v261, %v282
    %v284 = vadd.f32 %v279, %v283
    %v285 = vmax.f32 %v284, 0.0
    %v286 = vld [vmem:[#allocation6] sm:$0xff]
    %v287 = vld [vmem:[#allocation6 + $0x8] sm:$0xff]
    %v288 = vld [vmem:[#allocation6 + $0x10] sm:$0xff]
    %v289 = vld [vmem:[#allocation6 + $0x18] sm:$0xff]
    %v290 = vld [vmem:[#allocation6 + $0x20] sm:$0xff]
    %v291 = vld [vmem:[#allocation6 + $0x28] sm:$0xff]
    %v292 = vld [vmem:[#allocation6 + $0x30] sm:$0xff]
    %v293 = vld [vmem:[#allocation6 + $0x38] sm:$0xff]
    %v294 = vld [vmem:[#allocation6 + $0x40] sm:$0xff]
    %v295 = vld [vmem:[#allocation6 + $0x48] sm:$0xff]
    %v296 = vld [vmem:[#allocation6 + $0x50] sm:$0xff]
    %v297 = vld [vmem:[#allocation6 + $0x58] sm:$0xff]
    %v298 = vld [vmem:[#allocation6 + $0x60] sm:$0xff]
    %v299 = vld [vmem:[#allocation6 + $0x68] sm:$0xff]
    %v300 = vld [vmem:[#allocation6 + $0x70] sm:$0xff]
    %v301 = vld [vmem:[#allocation6 + $0x78] sm:$0xff]
    %v302 = vld [vmem:[%s4 + $0x6] sm:$0x1]
    %v303 = vlaneseq
    %v304 = vshrl.u32 %v303, 7
    %v305 = vsub.s32 0, %v304
    %v306 = vrot.slane %v302, %v305
    %307 = vmatprep.subr.mxu0 0.0
    %308 = vmatpush1.msra.mxu0 %v286
    %309 = vmatprep.subr.mxu0 0.0
    %310 = vmatpush1.msra.mxu0 %v287
    %311 = vmatprep.subr.mxu0 0.0
    %312 = vmatpush1.msra.mxu0 %v288
    %313 = vmatprep.subr.mxu0 0.0
    %314 = vmatpush1.msra.mxu0 %v289
    %315 = vmatprep.subr.mxu0 0.0
    %316 = vmatpush1.msra.mxu0 %v290
    %317 = vmatprep.subr.mxu0 0.0
    %318 = vmatpush1.msra.mxu0 %v291
    %319 = vmatprep.subr.mxu0 0.0
    %320 = vmatpush1.msra.mxu0 %v292
    %321 = vmatprep.subr.mxu0 0.0
    %322 = vmatpush1.msra.mxu0 %v293
    %323 = vmatprep.subr.mxu0 0.0
    %324 = vmatpush1.msra.mxu0 %v294
    %325 = vmatprep.subr.mxu0 0.0
    %326 = vmatpush1.msra.mxu0 %v295
    %327 = vmatprep.subr.mxu0 0.0
    %328 = vmatpush1.msra.mxu0 %v296
    %329 = vmatprep.subr.mxu0 0.0
    %330 = vmatpush1.msra.mxu0 %v297
    %331 = vmatprep.subr.mxu0 0.0
    %332 = vmatpush1.msra.mxu0 %v298
    %333 = vmatprep.subr.mxu0 0.0
    %334 = vmatpush1.msra.mxu0 %v299
    %335 = vmatprep.subr.mxu0 0.0
    %336 = vmatpush1.msra.mxu0 %v300
    %337 = vmatprep.subr.mxu0 0.0
    %338 = vmatpush1.msra.mxu0 %v301
    %339 = vmatprep.subr.mxu0 0.0
    %340 = vmatpush1.msra.mxu0 0.0
    %341 = vmatprep.subr.mxu0 0.0
    %342 = vmatpush1.msra.mxu0 0.0
    %343 = vmatprep.subr.mxu0 0.0
    %344 = vmatpush1.msra.mxu0 0.0
    %345 = vmatprep.subr.mxu0 0.0
    %346 = vmatpush1.msra.mxu0 0.0
    %347 = vmatprep.subr.mxu0 0.0
    %348 = vmatpush1.msra.mxu0 0.0
    %349 = vmatprep.subr.mxu0 0.0
    %350 = vmatpush1.msra.mxu0 0.0
    %351 = vmatprep.subr.mxu0 0.0
    %352 = vmatpush1.msra.mxu0 0.0
    %353 = vmatprep.subr.mxu0 0.0
    %354 = vmatpush1.msra.mxu0 0.0
    %355 = vmatprep.subr.mxu0 0.0
    %356 = vmatpush1.msra.mxu0 0.0
    %357 = vmatprep.subr.mxu0 0.0
    %358 = vmatpush1.msra.mxu0 0.0
    %359 = vmatprep.subr.mxu0 0.0
    %360 = vmatpush1.msra.mxu0 0.0
    %361 = vmatprep.subr.mxu0 0.0
    %362 = vmatpush1.msra.mxu0 0.0
    %363 = vmatprep.subr.mxu0 0.0
    %364 = vmatpush1.msra.mxu0 0.0
    %365 = vmatprep.subr.mxu0 0.0
    %366 = vmatpush1.msra.mxu0 0.0
    %367 = vmatprep.subr.mxu0 0.0
    %368 = vmatpush1.msra.mxu0 0.0
    %369 = vmatprep.subr.mxu0 0.0
    %370 = vmatpush1.msra.mxu0 0.0
    %371 = vmatprep.mubr.f32.mxu0 0.0
    %372 = vmatmul.mubr.f32.gmra.mrb[0].mxu0 %v285
    %v373 = vpop.f32.mrb[0].mxu0
    %v374 = vadd.f32 %v306, %v373
    %v375 = vpop.f32.mrb[0].mxu0
    %376 = vdwg.mxu0
    %v377 = vmax.f32 %v374, 0.0
    %378 = vst [vmem:[%s5] sm:$0xff] %v377
    // Predicated region
    $region34: #{actor_forward.1} parent=1 // pred_check
      _
    $region35: #{actor_forward.1} parent=1 // pred_check_branch
      %380 = sbr.rel (0) target = $region37
    $region36: #{actor_forward.1} parent=1 // pred_region
      _
    $region37: #{actor_forward.1} parent=1 // pred_fallthru
      _
    // Predicated region
    $region38: #{actor_forward.1} parent=1 // pred_check
      _
    $region39: #{actor_forward.1} parent=1 // pred_check_branch
      %382 = sbr.rel (0) target = $region41
    $region40: #{actor_forward.1} parent=1 // pred_region
      _
    $region41: #{actor_forward.1} parent=1 // pred_fallthru
      _
    %383 = vsyncpa [#allocation3], 1
    %384 = vsyncpa [#allocation5], 1

</llo_original>
